<compile_context>
chip_gen: v7x
topology: tpu7x:2x2x1
jax: 0.10.0
libtpu: 0.0.40
codegen_flags: <defaults>
</compile_context>

<pallas_src>
import functools

import jax
import jax.numpy as jnp
from jax.experimental import pallas as pl
from jax.experimental.pallas import tpu as pltpu


def _round_up(x, m):
    return ((x + m - 1) // m) * m


def _rope_kernel(inv_lane_ref, pos_ref, cos_ref, sin_ref, *,
                 attention_scaling, positions_per_row, rotary_dim):
    # inv_lane_ref: (1, W) f32, per-row pattern [inv, inv] repeated k times (W = k*D)
    # pos_ref:      (TILE_R, k) int32 — k consecutive positions per output row
    # cos_ref/sin_ref: (TILE_R, W) lane-dense output blocks
    k = positions_per_row
    D = rotary_dim

    # NOTE: positions above 2^24 lose exact integer representation in f32 (same as
    # the PyTorch module, which also computes in f32).
    pos = pos_ref[...].astype(jnp.float32)                      # (TILE_R, k)
    T = pos.shape[0]

    # Expand each position to its D lanes: lane l of a row belongs to position l // D.
    if k == 1:
        pos_lane = jnp.broadcast_to(pos, (T, D))                # (T, D)
    else:
        pos_lane = jnp.concatenate(
            [jnp.broadcast_to(pos[:, j:j + 1], (T, D)) for j in range(k)],
            axis=-1)                                            # (T, W)

    # Exact f32 elementwise outer product (the fp32 matmul in the PyTorch module is
    # the same math); inv_lane already encodes the cat(freqs, freqs) duplication.
    angles = pos_lane * inv_lane_ref[...]                       # (T, W)

    cos = jnp.cos(angles)
    sin = jnp.sin(angles)
    if attention_scaling != 1.0:                                # static (trace-time) branch
        cos = cos * attention_scaling
        sin = sin * attention_scaling

    cos_ref[...] = cos.astype(cos_ref.dtype)
    sin_ref[...] = sin.astype(sin_ref.dtype)


def rotary_embedding(position_ids, inv_freq, *, out_dtype, attention_scaling=1.0,
                     max_tile_rows=4096):
    """RoPE cos/sin tables.

    position_ids: [B, S] int32 (or [S] for the shared-across-batch fast path)
    inv_freq:     [D/2] float32
    returns:      (cos, sin), each [B, S, D] (or [1, S, D] for rank-1 positions).

    out_dtype should mirror x.dtype of the consumer (bf16 halves HBM writeback and is
    strongly preferred on v5e).
    """
    if position_ids.ndim == 1:
        # Shared-positions fast path: write one table instead of B identical copies;
        # the consumer broadcasts over batch.
        position_ids = position_ids[None, :]
    B, S = position_ids.shape
    half = inv_freq.shape[0]
    D = 2 * half
    out_bytes = jnp.dtype(out_dtype).itemsize

    # Lane packing factor: k consecutive positions per 128-lane output row.
    if D < 128 and 128 % D == 0:
        k = 128 // D
    else:
        # D >= 128 is already lane-dense; D not dividing 128 (rare) falls back unpacked.
        # TODO(synk): pad D for the 128 % D != 0 case if such head dims ever show up.
        k = 1

    # Pad the sequence up to a multiple of k so the lane-dense path is always taken
    # (no masked vst.msk / 25%-lane fallback); padded rows are sliced off at the end.
    S_pad = _round_up(S, k)
    pos = position_ids.astype(jnp.int32)
    if S_pad != S:
        pos = jnp.pad(pos, ((0, 0), (0, S_pad - S)))

    R = S_pad // k         # rows of the lane-dense slab
    W = k * D              # slab width (multiple of 128 when k > 1)

    # Per-row inv_freq pattern: [inv, inv] repeated k times  -> (1, W)
    inv_lane = jnp.tile(jnp.concatenate([inv_freq, inv_freq]).astype(jnp.float32), k)
    inv_lane = inv_lane.reshape(1, W)

    # Positions grouped k-per-row (free metadata reshape): (B, R, k)
    pos_rk = pos.reshape(B, R, k)

    # ---- Sequence tiling -----------------------------------------------------------
    # Row alignment: sublane granularity depends on output packing (f32: 8, bf16: 16).
    row_align = 8 * max(1, 4 // out_bytes)
    assert max_tile_rows % row_align == 0, "max_tile_rows must be sublane-aligned"

    tile_r = R if R <= max_tile_rows else max_tile_rows
    # Megacore: with B == 1 a single seq block would leave one v7x TensorCore idle and
    # give no output double-buffering.  Split the seq axis into up to 4 blocks.
    if B == 1 and R >= 2 * row_align:
        target_blocks = min(4, R // row_align)
        tile_r = min(tile_r, _round_up(pl.cdiv(R, target_blocks), row_align))
    grid = (B, pl.cdiv(R, tile_r))

    # ---- VMEM budget (double-buffered) ----------------------------------------------
    # positions block (tile_r, k) int32 lane-pads to 128 lanes -> tile_r * 512 B per buf;
    # each output block is tile_r * W * out_bytes per buf; inv_lane pads to one (8,128) tile.
    pos_block_bytes = tile_r * 128 * 4
    out_block_bytes = tile_r * W * out_bytes
    inv_block_bytes = 8 * max(W, 128) * 4
    footprint = 2 * (pos_block_bytes + 2 * out_block_bytes + inv_block_bytes)
    # Headroom for compiler scratch; clamp well inside v7x's 64 MiB physical VMEM and
    # above v5e's 16 MiB scoped default.
    vmem_limit = int(min(max(2 * footprint, 16 << 20), 48 << 20))

    kernel = functools.partial(
        _rope_kernel,
        attention_scaling=float(attention_scaling),
        positions_per_row=k,
        rotary_dim=D,
    )

    cost = pl.CostEstimate(
        flops=2 * B * S_pad * D,
        transcendentals=2 * B * S_pad * D,
        bytes_accessed=B * S_pad * 4 + W * 4 + 2 * B * S_pad * D * out_bytes,
    )

    grid_spec = pltpu.PrefetchScalarGridSpec(
        num_scalar_prefetch=0,
        grid=grid,
        in_specs=[
            # inv_lane: full (tiny) array, same block every grid step.
            pl.BlockSpec((1, W), lambda b, s: (0, 0)),
            # positions: one (tile_r, k) block per (batch, seq-tile); batch dim squeezed.
            pl.BlockSpec((None, tile_r, k), lambda b, s: (b, s, 0)),
        ],
        out_specs=[
            pl.BlockSpec((None, tile_r, W), lambda b, s: (b, s, 0)),
            pl.BlockSpec((None, tile_r, W), lambda b, s: (b, s, 0)),
        ],
    )

    cos, sin = pl.pallas_call(
        kernel,
        out_shape=(
            jax.ShapeDtypeStruct((B, R, W), out_dtype),
            jax.ShapeDtypeStruct((B, R, W), out_dtype),
        ),
        grid_spec=grid_spec,
        compiler_params=pltpu.CompilerParams(
            dimension_semantics=("parallel", "parallel"),
            vmem_limit_bytes=vmem_limit),
        cost_estimate=cost,
    )(inv_lane, pos_rk)

    # (B, R, k*D) -> (B, S_pad, D): identical row-major layout, metadata-only reshape;
    # then drop padded positions (slice is a no-op when S_pad == S).
    cos = cos.reshape(B, S_pad, D)
    sin = sin.reshape(B, S_pad, D)
    if S_pad != S:
        cos = cos[:, :S, :]
        sin = sin[:, :S, :]
    return cos, sin


def rotary_embedding_ref(position_ids, inv_freq, *, out_dtype, attention_scaling=1.0):
    # Pure-JAX reference mirroring the PyTorch code (outer product kept elementwise
    # so the reference is exact f32; it is the same math as the module's fp32 matmul).
    pos = position_ids.astype(jnp.float32)                       # (B, S)
    inv = inv_freq.astype(jnp.float32)                           # (D/2,)
    freqs = pos[:, :, None] * inv[None, None, :]                 # (B, S, D/2)
    emb = jnp.concatenate([freqs, freqs], axis=-1)               # (B, S, D)
    cos = jnp.cos(emb) * attention_scaling
    sin = jnp.sin(emb) * attention_scaling
    return cos.astype(out_dtype), sin.astype(out_dtype)


if __name__ == "__main__":
    def run_case(B, S, head_dim, out_dtype, rope_theta=10000.0, attention_scaling=1.0,
                 shared_positions=False):
        inv_freq = 1.0 / (
            rope_theta ** (jnp.arange(0, head_dim, 2, dtype=jnp.float32) / head_dim)
        )
        key = jax.random.PRNGKey(0)
        # x only contributes its dtype to the forward; give it a plausible shape.
        x = jax.random.normal(key, (B, S, head_dim), dtype=out_dtype)
        position_ids = jnp.broadcast_to(jnp.arange(S, dtype=jnp.int32)[None, :], (B, S))

        if shared_positions:
            # Rank-1 fast path: one table, broadcast over batch by the consumer.
            cos, sin = rotary_embedding(position_ids[0], inv_freq, out_dtype=x.dtype,
                                        attention_scaling=attention_scaling)
            cos = jnp.broadcast_to(cos, (B, S, head_dim))
            sin = jnp.broadcast_to(sin, (B, S, head_dim))
        else:
            cos, sin = rotary_embedding(position_ids, inv_freq, out_dtype=x.dtype,
                                        attention_scaling=attention_scaling)
        jax.block_until_ready((cos, sin))

        cos_ref, sin_ref = rotary_embedding_ref(
            position_ids, inv_freq, out_dtype=x.dtype, attention_scaling=attention_scaling
        )
        tol = 1e-5 if out_dtype == jnp.float32 else 2e-2
        assert cos.shape == (B, S, head_dim) and sin.shape == (B, S, head_dim)
        assert jnp.allclose(cos.astype(jnp.float32), cos_ref.astype(jnp.float32),
                            atol=tol, rtol=tol)
        assert jnp.allclose(sin.astype(jnp.float32), sin_ref.astype(jnp.float32),
                            atol=tol, rtol=tol)

    # Primary small case matching the module's toy config: head_dim=32 -> 4 positions
    # packed per 128-lane row.
    run_case(B=2, S=8, head_dim=32, out_dtype=jnp.float32)
    # head_dim=64 -> 2 positions per row, bf16 output (halves writeback; preferred on
    # v5e); B=1 exercises the megacore seq-axis split (grid (1, 2)).
    run_case(B=1, S=64, head_dim=64, out_dtype=jnp.bfloat16)
    # Non-multiple S (padding path), ragged last seq tile, shared-positions batch dedup,
    # and attention_scaling != 1.
    run_case(B=2, S=141, head_dim=32, out_dtype=jnp.float32, attention_scaling=0.83,
             shared_positions=True)

    print("KERNEL_OK")
</pallas_src>

<mosaic_0001>
module attributes {stable_mosaic.version = 11 : i64} {
  func.func @_rope_kernel(%arg0: i32, %arg1: i32, %arg2: memref<1x128xf32, #tpu.memory_space<vmem>>, %arg3: memref<1x2x4xi32, #tpu.memory_space<vmem>>, %arg4: memref<1x2x128xf32, #tpu.memory_space<vmem>>, %arg5: memref<1x2x128xf32, #tpu.memory_space<vmem>>) attributes {dimension_semantics = [#tpu.dimension_semantics<parallel>, #tpu.dimension_semantics<parallel>], iteration_bounds = array<i64: 2, 1>, scalar_prefetch = 0 : i64, scratch_operands = 0 : i64, tpu.core_type = #tpu.core_type<tc>, window_params = [{pipeline_mode = #tpu.pipeline_mode<synchronous>, transform_indices = @transform_0, window_bounds = array<i64: 1, 128>}, {transform_indices = @transform_1, window_bounds = array<i64: 1, 2, 4>}, {transform_indices = @transform_2, window_bounds = array<i64: 1, 2, 128>}, {transform_indices = @transform_3, window_bounds = array<i64: 1, 2, 128>}]} {
    %c0 = arith.constant 0 : index
    %c0_0 = arith.constant 0 : index
    %c0_1 = arith.constant 0 : index
    %0 = vector.load %arg3[%c0, %c0_0, %c0_1] : memref<1x2x4xi32, #tpu.memory_space<vmem>>, vector<1x2x4xi32>
    %1 = vector.shape_cast %0 : vector<1x2x4xi32> to vector<2x4xi32>
    %2 = arith.sitofp %1 : vector<2x4xi32> to vector<2x4xf32>
    %3 = vector.extract_strided_slice %2 {offsets = [0, 0], sizes = [2, 1], strides = [1, 1]} : vector<2x4xf32> to vector<2x1xf32>
    %4 = vector.shape_cast %3 : vector<2x1xf32> to vector<2x1xf32>
    %5 = vector.broadcast %4 : vector<2x1xf32> to vector<2x32xf32>
    %6 = vector.extract_strided_slice %2 {offsets = [0, 1], sizes = [2, 1], strides = [1, 1]} : vector<2x4xf32> to vector<2x1xf32>
    %7 = vector.shape_cast %6 : vector<2x1xf32> to vector<2x1xf32>
    %8 = vector.broadcast %7 : vector<2x1xf32> to vector<2x32xf32>
    %9 = vector.extract_strided_slice %2 {offsets = [0, 2], sizes = [2, 1], strides = [1, 1]} : vector<2x4xf32> to vector<2x1xf32>
    %10 = vector.shape_cast %9 : vector<2x1xf32> to vector<2x1xf32>
    %11 = vector.broadcast %10 : vector<2x1xf32> to vector<2x32xf32>
    %12 = vector.extract_strided_slice %2 {offsets = [0, 3], sizes = [2, 1], strides = [1, 1]} : vector<2x4xf32> to vector<2x1xf32>
    %13 = vector.shape_cast %12 : vector<2x1xf32> to vector<2x1xf32>
    %14 = vector.broadcast %13 : vector<2x1xf32> to vector<2x32xf32>
    %15 = tpu.concatenate %5, %8, %11, %14 in 1 : vector<2x32xf32>, vector<2x32xf32>, vector<2x32xf32>, vector<2x32xf32> -> vector<2x128xf32>
    %c0_2 = arith.constant 0 : index
    %c0_3 = arith.constant 0 : index
    %16 = vector.load %arg2[%c0_2, %c0_3] : memref<1x128xf32, #tpu.memory_space<vmem>>, vector<1x128xf32>
    %17 = vector.broadcast %16 : vector<1x128xf32> to vector<2x128xf32>
    %18 = arith.mulf %15, %17 : vector<2x128xf32>
    %19 = math.cos %18 : vector<2x128xf32>
    %20 = math.sin %18 : vector<2x128xf32>
    %c0_4 = arith.constant 0 : index
    %c0_5 = arith.constant 0 : index
    %c0_6 = arith.constant 0 : index
    %21 = vector.load %arg4[%c0_4, %c0_5, %c0_6] : memref<1x2x128xf32, #tpu.memory_space<vmem>>, vector<1x2x128xf32>
    %22 = vector.shape_cast %21 : vector<1x2x128xf32> to vector<2x128xf32>
    %23 = vector.shape_cast %19 : vector<2x128xf32> to vector<1x2x128xf32>
    tpu.vector_store %arg4[%c0_4, %c0_5, %c0_6], %23 {strides = array<i32>} : memref<1x2x128xf32, #tpu.memory_space<vmem>>, vector<1x2x128xf32>,
    %c0_7 = arith.constant 0 : index
    %c0_8 = arith.constant 0 : index
    %c0_9 = arith.constant 0 : index
    %24 = vector.load %arg5[%c0_7, %c0_8, %c0_9] : memref<1x2x128xf32, #tpu.memory_space<vmem>>, vector<1x2x128xf32>
    %25 = vector.shape_cast %24 : vector<1x2x128xf32> to vector<2x128xf32>
    %26 = vector.shape_cast %20 : vector<2x128xf32> to vector<1x2x128xf32>
    tpu.vector_store %arg5[%c0_7, %c0_8, %c0_9], %26 {strides = array<i32>} : memref<1x2x128xf32, #tpu.memory_space<vmem>>, vector<1x2x128xf32>,
    return
  }
  func.func @transform_0(%arg0: i32, %arg1: i32) -> (i32, i32) {
    %c0_i32 = arith.constant 0 : i32
    %c0_i32_0 = arith.constant 0 : i32
    %c0_i32_1 = arith.constant 0 : i32
    return %c0_i32, %c0_i32_0 : i32, i32
  }
  func.func @transform_1(%arg0: i32, %arg1: i32) -> (i32, i32, i32) {
    %c0_i32 = arith.constant 0 : i32
    %c0_i32_0 = arith.constant 0 : i32
    return %arg0, %arg1, %c0_i32 : i32, i32, i32
  }
  func.func @transform_2(%arg0: i32, %arg1: i32) -> (i32, i32, i32) {
    %c0_i32 = arith.constant 0 : i32
    %c0_i32_0 = arith.constant 0 : i32
    return %arg0, %arg1, %c0_i32 : i32, i32, i32
  }
  func.func @transform_3(%arg0: i32, %arg1: i32) -> (i32, i32, i32) {
    %c0_i32 = arith.constant 0 : i32
    %c0_i32_0 = arith.constant 0 : i32
    return %arg0, %arg1, %c0_i32 : i32, i32, i32
  }
}

</mosaic_0001>

<llo_original>
// kernel: tpu_custom_call.1
$region0: #{tpu_custom_call.1}
  #allocation0 [shape = 'u32[]', space=smem, size = 0x4, offset = 0x4, fixed_abs, tag = 'smem constant byte address 0x4 - core index']
  #allocation1 [shape = 'u32[144,128]{1,0:T(1,128)}', space=vmem, size = 0x12000, scoped, tag = 'internal scratch']
  %s0 = inlined_call_operand.hbm [shape: f32[1,128], index: 0, kind: input, shape index: {}]
  %s1 = inlined_call_operand.hbm [shape: s32[2,2,4], index: 1, kind: input, shape index: {}]
  %s2 = inlined_call_operand.hbm [shape: f32[2,2,128], index: 2, kind: output, shape index: {0}]
  %s3 = inlined_call_operand.hbm [shape: f32[2,2,128], index: 3, kind: output, shape index: {1}]
  %4 = xla_tuple %s2, %s3
  %s5 = sld [smem:[#allocation0]]
  $region57: #{tpu_custom_call.1} parent=0
    _
  %s7 = ssub.s32 1, %s5
  %s8 = scalar_select 0, %s7, %s5
  $region1: #{tpu_custom_call.1} parent=0
    #allocation2 [shape = 'u8[512]{0}', space=vmem, size = 0x400, scoped, tag = 'input window, operand 0, single buffered']
    #allocation3 [shape = 's32[2]{0}', space=sflag, size = 0x8, scoped, tag = 'scoped memory for tpu_custom_call.1']
    #allocation4 [shape = 's32[2]{0}', space=sflag, size = 0x8, scoped, tag = 'scoped memory for tpu_custom_call.1']
    #allocation5 [shape = 'u8[2048]{0}', space=vmem, size = 0x800, scoped, tag = 'input window, operand 1']
    #allocation6 [shape = 's32[2]{0}', space=sflag, size = 0x8, scoped, tag = 'scoped memory for tpu_custom_call.1']
    #allocation7 [shape = 'u8[2048]{0}', space=vmem, size = 0x800, scoped, tag = 'output window, operand 0']
    #allocation8 [shape = 'u8[2048]{0}', space=vmem, size = 0x800, scoped, tag = 'output window, operand 1']
    #allocation9 [shape = 's32[2]{0}', space=sflag, size = 0x8, scoped, tag = 'scoped memory for tpu_custom_call.1']
    %9 = vsyncpa [#allocation3], 0
    %10 = vsyncpa [#allocation6], 0
    %s11 = scalar_lea.sflag [#allocation6], 1
    %12 = vsyncpa %s11, 0
    %13 = vsyncpa [#allocation4], 0
    %s14 = scalar_lea.sflag [#allocation4], 1
    %15 = vsyncpa %s14, 0
    %16 = vsyncpa [#allocation9], 0
    %s17 = scalar_lea.sflag [#allocation9], 1
    %18 = vsyncpa %s17, 0
    loop: start=0, step=1, limit=4
    $region2: #{tpu_custom_call.1} parent=1 // loop_pre_header
      _
    $region3: #{tpu_custom_call.1} parent=1 // loop_header
      %s20 = sphi 0, %s24
      %p21 = scmp.ge.s32.totalorder %s20, 4
      %s27 = sphi 0, %s39
      %s28 = sphi 0, %s35
      %s29 = sphi 0, %s27
      %s30 = sphi 0, %s28
      %s31 = sphi 0, %s29
      %s32 = sphi 0, %s30
      %s40 = sphi 0, %s40
      %s42 = sphi 0, %s40
      %s43 = sphi 0, %s42
      %s57 = sphi 0, %s43
      %s65 = sphi 0, %s67
      %s68 = sphi 0, %s65
      %s69 = sphi 0, %s68
      %s85 = sphi 0, %s69
      %s93 = sphi 0, %s95
      %s96 = sphi 0, %s93
      %s97 = sphi 0, %s96
      %s113 = sphi 0, %s97
      %s121 = sphi 0, %s123
      %s124 = sphi 0, %s121
      %s125 = sphi 0, %s124
      %s141 = sphi 0, %s125
    $region4: #{tpu_custom_call.1} parent=1 // loop_header_branch
      %23 = sbr.rel (%p21) target = $region8
    $region5: #{tpu_custom_call.1} parent=1 // loop_body
      %s25 = ssub.s32 %s20, 1
      %s26 = ssub.s32 %s20, 2
      %s33 = sadd.s32 1, %s28
      %p34 = scmp.ge.s32.totalorder %s33, 1
      %s35 = scalar_select %p34, 0, %s33
      %s36 = sadd.s32 1, %s27
      %s37 = scalar_select %p34, %s36, %s27
      %p38 = scmp.ge.s32.totalorder %s37, 2
      %s39 = scalar_select %p38, 0, %s37
      %s41 = sadd.s32 %s40, 1
      %p44 = scmp.eq.s32.totalorder %s20, 1
      %p45 = scmp.ne.s32.totalorder %s40, %s42
      %p46 = scmp.eq.s32.totalorder %s20, 0
      %p47 = por %p45, %p46
      %p48 = scmp.ne.s32.totalorder %s40, %s42
      %p49 = scmp.eq.s32.totalorder %s25, 1
      %p50 = por %p48, %p49
      %p51 = scmp.ne.s32.totalorder %s42, %s43
      %p52 = scmp.eq.s32.totalorder %s25, 0
      %p53 = por %p51, %p52
      %p54 = scmp.ne.s32.totalorder %s42, %s43
      %p55 = scmp.eq.s32.totalorder %s26, 1
      %p56 = por %p54, %p55
      %p58 = scmp.ne.s32.totalorder %s43, %s57
      %p59 = scmp.eq.s32.totalorder %s26, 0
      %p60 = por %p58, %p59
      %s61 = ssub.s32 %s27, %s39
      %s62 = ssub.s32 %s28, %s35
      %s63 = sor.u32 %s61, %s62
      %p64 = scmp.eq.s32.totalorder %s63, 0
      %s66 = sadd.s32 %s65, 1
      %s67 = scalar_select %p64, %s65, %s66
      %p70 = pneg %p64
      %p71 = scmp.eq.s32.totalorder %s20, 1
      %p72 = por %p70, %p71
      %p73 = scmp.ne.s32.totalorder %s65, %s68
      %p74 = scmp.eq.s32.totalorder %s20, 0
      %p75 = por %p73, %p74
      %p76 = scmp.ne.s32.totalorder %s65, %s68
      %p77 = scmp.eq.s32.totalorder %s25, 1
      %p78 = por %p76, %p77
      %p79 = scmp.ne.s32.totalorder %s68, %s69
      %p80 = scmp.eq.s32.totalorder %s25, 0
      %p81 = por %p79, %p80
      %p82 = scmp.ne.s32.totalorder %s68, %s69
      %p83 = scmp.eq.s32.totalorder %s26, 1
      %p84 = por %p82, %p83
      %p86 = scmp.ne.s32.totalorder %s69, %s85
      %p87 = scmp.eq.s32.totalorder %s26, 0
      %p88 = por %p86, %p87
      %s89 = ssub.s32 %s27, %s39
      %s90 = ssub.s32 %s28, %s35
      %s91 = sor.u32 %s89, %s90
      %p92 = scmp.eq.s32.totalorder %s91, 0
      %s94 = sadd.s32 %s93, 1
      %s95 = scalar_select %p92, %s93, %s94
      %p98 = pneg %p92
      %p99 = scmp.eq.s32.totalorder %s20, 1
      %p100 = por %p98, %p99
      %p101 = scmp.ne.s32.totalorder %s93, %s96
      %p102 = scmp.eq.s32.totalorder %s20, 0
      %p103 = por %p101, %p102
      %p104 = scmp.ne.s32.totalorder %s93, %s96
      %p105 = scmp.eq.s32.totalorder %s25, 1
      %p106 = por %p104, %p105
      %p107 = scmp.ne.s32.totalorder %s96, %s97
      %p108 = scmp.eq.s32.totalorder %s25, 0
      %p109 = por %p107, %p108
      %p110 = scmp.ne.s32.totalorder %s96, %s97
      %p111 = scmp.eq.s32.totalorder %s26, 1
      %p112 = por %p110, %p111
      %p114 = scmp.ne.s32.totalorder %s97, %s113
      %p115 = scmp.eq.s32.totalorder %s26, 0
      %p116 = por %p114, %p115
      %s117 = ssub.s32 %s27, %s39
      %s118 = ssub.s32 %s28, %s35
      %s119 = sor.u32 %s117, %s118
      %p120 = scmp.eq.s32.totalorder %s119, 0
      %s122 = sadd.s32 %s121, 1
      %s123 = scalar_select %p120, %s121, %s122
      %p126 = pneg %p120
      %p127 = scmp.eq.s32.totalorder %s20, 1
      %p128 = por %p126, %p127
      %p129 = scmp.ne.s32.totalorder %s121, %s124
      %p130 = scmp.eq.s32.totalorder %s20, 0
      %p131 = por %p129, %p130
      %p132 = scmp.ne.s32.totalorder %s121, %s124
      %p133 = scmp.eq.s32.totalorder %s25, 1
      %p134 = por %p132, %p133
      %p135 = scmp.ne.s32.totalorder %s124, %s125
      %p136 = scmp.eq.s32.totalorder %s25, 0
      %p137 = por %p135, %p136
      %p138 = scmp.ne.s32.totalorder %s124, %s125
      %p139 = scmp.eq.s32.totalorder %s26, 1
      %p140 = por %p138, %p139
      %p142 = scmp.ne.s32.totalorder %s125, %s141
      %p143 = scmp.eq.s32.totalorder %s26, 0
      %p144 = por %p142, %p143
      %p145 = scmp.le.s32.totalorder 1, %s20
      %p146 = scmp.lt.s32.totalorder %s20, 3
      %p147 = pnand %p145, %p146
      %p148 = pneg %p147
      // Predicated region
      $region9: #{tpu_custom_call.1} parent=5 // pred_check
        _
      $region10: #{tpu_custom_call.1} parent=5 // pred_check_branch
        %150 = sbr.rel (%p147) target = $region12
      $region11: #{tpu_custom_call.1} parent=5 // pred_region
        %s151 = ssub.s32 %s20, 1
        // Predicated region
        $region13: #{tpu_custom_call.1} parent=11 // pred_check
          %p152 = pneg %p53
        $region14: #{tpu_custom_call.1} parent=11 // pred_check_branch
          %154 = sbr.rel (%p152) target = $region16
        $region15: #{tpu_custom_call.1} parent=11 // pred_region
          %s156 = ssub.s32 16, 16
          %157 = vsyncadd [#allocation3], %s156
          %s159 = sshll.u32 [#allocation2], 4
          %s160 = int_to_ptr.vmem [resolvable:$true] %s159
          %162 = dma.hbm_to_vmem [thread:$0]  %s0, 16, %s160, [#allocation3]
        $region16: #{tpu_custom_call.1} parent=11 // pred_fallthru
          _
      $region12: #{tpu_custom_call.1} parent=5 // pred_fallthru
        _
      %p163 = scmp.lt.s32.totalorder %s20, 2
      // Predicated region
      $region17: #{tpu_custom_call.1} parent=5 // pred_check
        %p164 = pneg %p163
      $region18: #{tpu_custom_call.1} parent=5 // pred_check_branch
        %166 = sbr.rel (%p164) target = $region20
      $region19: #{tpu_custom_call.1} parent=5 // pred_region
        // Predicated region
        $region21: #{tpu_custom_call.1} parent=19 // pred_check
          %p167 = pneg %p75
        $region22: #{tpu_custom_call.1} parent=19 // pred_check_branch
          %169 = sbr.rel (%p167) target = $region24
        $region23: #{tpu_custom_call.1} parent=19 // pred_region
          %s170 = sand.u32 %s65, 1
          %s171 = scalar_lea.sflag [#allocation6], %s170
          %s172 = sand.u32 %s65, 1
          %s173 = smul.addr %s172, 2
          %s174 = scalar_lea.vmem [#allocation5], %s173
          %s176 = ssub.s32 32, 32
          %177 = vsyncadd %s171, %s176
          %s178 = sadd.s32 %s28, %s27
          %s179 = smul.addr %s178, 32
          %s180 = scalar_lea.hbm %s1, %s179
          %s182 = sshll.u32 %s174, 4
          %s183 = int_to_ptr.vmem [resolvable:$true] %s182
          %185 = dma.hbm_to_vmem [thread:$0]  %s180, 32, %s183, %s171
        $region24: #{tpu_custom_call.1} parent=19 // pred_fallthru
          _
      $region20: #{tpu_custom_call.1} parent=5 // pred_fallthru
        _
      %p186 = scmp.le.s32.totalorder 1, %s20
      %p187 = scmp.lt.s32.totalorder %s20, 3
      %p188 = pnand %p186, %p187
      %p189 = pneg %p188
      // Predicated region
      $region25: #{tpu_custom_call.1} parent=5 // pred_check
        _
      $region26: #{tpu_custom_call.1} parent=5 // pred_check_branch
        %191 = sbr.rel (%p188) target = $region28
      $region27: #{tpu_custom_call.1} parent=5 // pred_region
        %s192 = ssub.s32 %s20, 1
        // Predicated region
        $region29: #{tpu_custom_call.1} parent=27 // pred_check
          %p193 = pneg %p53
        $region30: #{tpu_custom_call.1} parent=27 // pred_check_branch
          %195 = sbr.rel (%p193) target = $region32
        $region31: #{tpu_custom_call.1} parent=27 // pred_region
          %196 = dma.done [#allocation3], 16
        $region32: #{tpu_custom_call.1} parent=27 // pred_fallthru
          _
        %s197 = sand.u32 %s68, 1
        %s198 = scalar_lea.sflag [#allocation6], %s197
        %s199 = sand.u32 %s68, 1
        %s200 = smul.addr %s199, 2
        %s201 = scalar_lea.vmem [#allocation5], %s200
        // Predicated region
        $region33: #{tpu_custom_call.1} parent=27 // pred_check
          %p202 = pneg %p81
        $region34: #{tpu_custom_call.1} parent=27 // pred_check_branch
          %204 = sbr.rel (%p202) target = $region36
        $region35: #{tpu_custom_call.1} parent=27 // pred_region
          %205 = dma.done %s198, 32
        $region36: #{tpu_custom_call.1} parent=27 // pred_fallthru
          _
        %p206 = pneg %p53
        %p207 = pneg %p50
        %s208 = sand.u32 %s68, 1
        %s209 = scalar_lea.sflag [#allocation6], %s208
        %s210 = sand.u32 %s68, 1
        %s211 = smul.addr %s210, 2
        %s212 = scalar_lea.vmem [#allocation5], %s211
        %p213 = pneg %p81
        %p214 = pneg %p78
        %p215 = pneg %p109
        %p216 = pneg %p106
        %s217 = sand.u32 %s96, 1
        %s218 = scalar_lea.sflag [#allocation4], %s217
        %s219 = sand.u32 %s96, 1
        %s220 = smul.addr %s219, 2
        %s221 = scalar_lea.vmem [#allocation7], %s220
        %p222 = pneg %p137
        %p223 = pneg %p134
        %s224 = sand.u32 %s124, 1
        %s225 = scalar_lea.sflag [#allocation9], %s224
        %s226 = sand.u32 %s124, 1
        %s227 = smul.addr %s226, 2
        %s228 = scalar_lea.vmem [#allocation8], %s227
        %v229 = vld [vmem:[%s201] sm:$0x3]
        %v230 = vcvt.s32.f32 %v229
        %232 = vset.pattern.permute.xlu0 0
        %233 = vperm.xlu0 %232, %v230
        %v234 = vpop.permute.xlu0 %233
        %236 = vset.pattern.permute.xlu0 1
        %237 = vperm.xlu0 %236, %v230
        %v238 = vpop.permute.xlu0 %237
        %240 = vset.pattern.permute.xlu0 2
        %241 = vperm.xlu0 %240, %v230
        %v242 = vpop.permute.xlu0 %241
        %244 = vset.pattern.permute.xlu0 3
        %245 = vperm.xlu0 %244, %v230
        %v246 = vpop.permute.xlu0 %245
        %vm248 = vcmask 261120
        %v249 = vsel %vm248, %v234, %v238
        %vm250 = vcmask 523264
        %v251 = vsel %vm250, %v249, %v242
        %vm252 = vcmask 785408
        %v253 = vsel %vm252, %v251, %v246
        %v254 = vld [vmem:[#allocation2] sm:$0x1]
        %v256 = vlaneseq
        %v257 = vshrl.u32 %v256, 7
        %v258 = vsub.s32 0, %v257
        %v259 = vrot.slane %v254, %v258
        %v261 = vmul.f32 %v253, %v259
        %v262 = vand.u32 2147483647, %v261
        %vm263 = vcmp.le.f32.partialorder %v262, 0.7853982
        %vm264 = vcmp.lt.s32.totalorder %v261, 0
        %v265 = vand.u32 %v261, 2139095040
        %v266 = vshrl.u32 %v265, 23
        %v267 = vsub.s32 %v266, 127
        %v268 = vand.u32 2147483647, %v261
        %v269 = vand.u32 %v268, 8388607
        %v270 = vor.u32 %v269, 8388608
        %v271 = vsub.s32 0, %v270
        %v272 = vadd.s32 %v267, 1
        %vm273 = vcmp.gt.s32.totalorder %v272, 0
        %v274 = vsel %vm273, %v272, 0
        %v275 = vshrl.u32 %v274, 5
        %v276 = vand.u32 %v274, 31
        %v277 = vsub.s32 32, %v276
        %v278 = vshrl.u32 683565275, %v277
        %v279 = vshll.u32 683565275, %v276
        %v280 = vshrl.u32 2475754826, %v277
        %v281 = vor.u32 %v279, %v280
        %v282 = vshll.u32 2475754826, %v276
        %v283 = vshrl.u32 2131351028, %v277
        %v284 = vor.u32 %v282, %v283
        %v285 = vshll.u32 2131351028, %v276
        %v286 = vshrl.u32 2102212464, %v277
        %v287 = vor.u32 %v285, %v286
        %v288 = vshll.u32 2102212464, %v276
        %v289 = vshrl.u32 920167782, %v277
        %v290 = vor.u32 %v288, %v289
        %v291 = vshll.u32 920167782, %v276
        %v292 = vshrl.u32 1326507024, %v277
        %v293 = vor.u32 %v291, %v292
        %vm294 = vcmp.lt.s32.totalorder %v275, 1
        %vm295 = vcmp.lt.s32.totalorder %v275, 2
        %vm296 = vcmp.lt.s32.totalorder %v275, 3
        %vm297 = vcmp.lt.s32.totalorder %v275, 4
        %v298 = vsel %vm294, %v278, %v281
        %v299 = vsel %vm297, %v287, 2102212464
        %v300 = vsel %vm296, %v284, %v299
        %v301 = vsel %vm295, %v298, %v300
        %v302 = vsel %vm294, %v281, %v284
        %v303 = vsel %vm297, %v290, 920167782
        %v304 = vsel %vm296, %v287, %v303
        %v305 = vsel %vm295, %v302, %v304
        %v306 = vsel %vm294, %v284, %v287
        %v307 = vsel %vm297, %v293, 1326507024
        %v308 = vsel %vm296, %v290, %v307
        %v309 = vsel %vm295, %v306, %v308
        %v310 = vshll.u32 %v270, 8
        %v311 = vmul.u32.u64.compose %v310, %v309
        %v312 = vextract.low.u32 %v311
        %v313 = vextract.high.u32 %v311
        %v314 = vmul.u32.u64.compose %v310, %v305
        %v315 = vextract.low.u32 %v314
        %v316 = vextract.high.u32 %v314
        %v317 = vmul.u32 %v310, %v301
        %v318 = vadd.s32 %v313, %v315
        %vm319 = vc.u32 %v313, %v315
        %v320 = vadd.s32 %v316, 1
        %v321 = vsel %vm319, %v320, %v316
        %v322 = vadd.s32 %v317, %v321
        %v323 = vadd.s32 %v322, 536870912
        %v324 = vshrl.u32 %v323, 30
        %v325 = vshll.u32 %v324, 30
        %v326 = vsub.s32 %v322, %v325
        %vm327 = vcmp.lt.s32.totalorder %v326, 0
        %v328 = vsub.s32 0, %v326
        %v329 = vsel %vm327, %v328, %v326
        %v330 = vclz %v329
        %v331 = vsub.s32 %v330, 2
        %vm332 = vcmp.gt.s32.totalorder 0, %v331
        %v333 = vsel %vm332, 0, %v331
        %v334 = vsub.s32 32, %v333
        %v335 = vshll.u32 %v326, %v333
        %v336 = vshrl.u32 %v318, %v334
        %v337 = vor.u32 %v335, %v336
        %v338 = vsub.s32 4294967266, %v333
        %v339 = vadd.s32 %v338, 127
        %v340 = vshll.u32 %v339, 23
        %v341 = vor.u32 4788187, %v340
        %v342 = vand.u32 2147483647, %v341
        %v344 = vcvt.s32.f32 %v337
        %v345 = vmul.f32 %v344, %v342
        %v346 = vxor.u32 %v345, 2147483648
        %v347 = vsel %vm264, %v346, %v345
        %v348 = vsub.s32 4, %v324
        %v349 = vsel %vm264, %v348, %v324
        %v350 = vsel %vm263, %v261, %v347
        %v351 = vsel %vm263, 0, %v349
        %v352 = vcosq.f32.pop %v350
        %v353 = vsinq.f32.pop %v350
        %vm354 = vweird.f32 %v261
        %v355 = vand.u32 %v351, 3
        %vm356 = vcmp.lt.s32.totalorder %v355, 2
        %vm357 = vcmp.eq.s32.totalorder %v355, 0
        %v358 = vxor.u32 %v353, 2147483648
        %v359 = vsel %vm357, %v352, %v358
        %vm360 = vcmp.eq.s32.totalorder %v355, 2
        %v361 = vxor.u32 %v352, 2147483648
        %v362 = vsel %vm360, %v361, %v353
        %v363 = vsel %vm356, %v359, %v362
        %v364 = vsel %vm354, nan, %v363
        %v365 = vand.u32 2147483647, %v261
        %vm366 = vcmp.le.f32.partialorder %v365, 0.7853982
        %vm367 = vcmp.lt.s32.totalorder %v261, 0
        %v368 = vand.u32 %v261, 2139095040
        %v369 = vshrl.u32 %v368, 23
        %v370 = vsub.s32 %v369, 127
        %v371 = vand.u32 2147483647, %v261
        %v372 = vand.u32 %v371, 8388607
        %v373 = vor.u32 %v372, 8388608
        %v374 = vsub.s32 0, %v373
        %v375 = vadd.s32 %v370, 1
        %vm376 = vcmp.gt.s32.totalorder %v375, 0
        %v377 = vsel %vm376, %v375, 0
        %v378 = vshrl.u32 %v377, 5
        %v379 = vand.u32 %v377, 31
        %v380 = vsub.s32 32, %v379
        %v381 = vshrl.u32 683565275, %v380
        %v382 = vshll.u32 683565275, %v379
        %v383 = vshrl.u32 2475754826, %v380
        %v384 = vor.u32 %v382, %v383
        %v385 = vshll.u32 2475754826, %v379
        %v386 = vshrl.u32 2131351028, %v380
        %v387 = vor.u32 %v385, %v386
        %v388 = vshll.u32 2131351028, %v379
        %v389 = vshrl.u32 2102212464, %v380
        %v390 = vor.u32 %v388, %v389
        %v391 = vshll.u32 2102212464, %v379
        %v392 = vshrl.u32 920167782, %v380
        %v393 = vor.u32 %v391, %v392
        %v394 = vshll.u32 920167782, %v379
        %v395 = vshrl.u32 1326507024, %v380
        %v396 = vor.u32 %v394, %v395
        %vm397 = vcmp.lt.s32.totalorder %v378, 1
        %vm398 = vcmp.lt.s32.totalorder %v378, 2
        %vm399 = vcmp.lt.s32.totalorder %v378, 3
        %vm400 = vcmp.lt.s32.totalorder %v378, 4
        %v401 = vsel %vm397, %v381, %v384
        %v402 = vsel %vm400, %v390, 2102212464
        %v403 = vsel %vm399, %v387, %v402
        %v404 = vsel %vm398, %v401, %v403
        %v405 = vsel %vm397, %v384, %v387
        %v406 = vsel %vm400, %v393, 920167782
        %v407 = vsel %vm399, %v390, %v406
        %v408 = vsel %vm398, %v405, %v407
        %v409 = vsel %vm397, %v387, %v390
        %v410 = vsel %vm400, %v396, 1326507024
        %v411 = vsel %vm399, %v393, %v410
        %v412 = vsel %vm398, %v409, %v411
        %v413 = vshll.u32 %v373, 8
        %v414 = vmul.u32.u64.compose %v413, %v412
        %v415 = vextract.low.u32 %v414
        %v416 = vextract.high.u32 %v414
        %v417 = vmul.u32.u64.compose %v413, %v408
        %v418 = vextract.low.u32 %v417
        %v419 = vextract.high.u32 %v417
        %v420 = vmul.u32 %v413, %v404
        %v421 = vadd.s32 %v416, %v418
        %vm422 = vc.u32 %v416, %v418
        %v423 = vadd.s32 %v419, 1
        %v424 = vsel %vm422, %v423, %v419
        %v425 = vadd.s32 %v420, %v424
        %v426 = vadd.s32 %v425, 536870912
        %v427 = vshrl.u32 %v426, 30
        %v428 = vshll.u32 %v427, 30
        %v429 = vsub.s32 %v425, %v428
        %vm430 = vcmp.lt.s32.totalorder %v429, 0
        %v431 = vsub.s32 0, %v429
        %v432 = vsel %vm430, %v431, %v429
        %v433 = vclz %v432
        %v434 = vsub.s32 %v433, 2
        %vm435 = vcmp.gt.s32.totalorder 0, %v434
        %v436 = vsel %vm435, 0, %v434
        %v437 = vsub.s32 32, %v436
        %v438 = vshll.u32 %v429, %v436
        %v439 = vshrl.u32 %v421, %v437
        %v440 = vor.u32 %v438, %v439
        %v441 = vsub.s32 4294967266, %v436
        %v442 = vadd.s32 %v441, 127
        %v443 = vshll.u32 %v442, 23
        %v444 = vor.u32 4788187, %v443
        %v445 = vand.u32 2147483647, %v444
        %v447 = vcvt.s32.f32 %v440
        %v448 = vmul.f32 %v447, %v445
        %v449 = vxor.u32 %v448, 2147483648
        %v450 = vsel %vm367, %v449, %v448
        %v451 = vsub.s32 4, %v427
        %v452 = vsel %vm367, %v451, %v427
        %v453 = vsel %vm366, %v261, %v450
        %v454 = vsel %vm366, 0, %v452
        %v455 = vcosq.f32.pop %v453
        %v456 = vsinq.f32.pop %v453
        %vm457 = vweird.f32 %v261
        %v458 = vadd.s32 %v454, 3
        %v459 = vand.u32 %v458, 3
        %vm460 = vcmp.lt.s32.totalorder %v459, 2
        %vm461 = vcmp.eq.s32.totalorder %v459, 0
        %v462 = vxor.u32 %v456, 2147483648
        %v463 = vsel %vm461, %v455, %v462
        %vm464 = vcmp.eq.s32.totalorder %v459, 2
        %v465 = vxor.u32 %v455, 2147483648
        %v466 = vsel %vm464, %v465, %v456
        %v467 = vsel %vm460, %v463, %v466
        %v468 = vsel %vm457, nan, %v467
        %469 = vst [vmem:[%s221] sm:$0x3] %v364
        %470 = vst [vmem:[%s228] sm:$0x3] %v468
        %s471 = sand.u32 %s96, 1
        %s472 = scalar_lea.sflag [#allocation4], %s471
        %s473 = sand.u32 %s96, 1
        %s474 = smul.addr %s473, 2
        %s475 = scalar_lea.vmem [#allocation7], %s474
        %s476 = sand.u32 %s124, 1
        %s477 = scalar_lea.sflag [#allocation9], %s476
        %s478 = sand.u32 %s124, 1
        %s479 = smul.addr %s478, 2
        %s480 = scalar_lea.vmem [#allocation8], %s479
        // Predicated region
        $region37: #{tpu_custom_call.1} parent=27 // pred_check
          %p481 = pneg %p106
        $region38: #{tpu_custom_call.1} parent=27 // pred_check_branch
          %483 = sbr.rel (%p481) target = $region40
        $region39: #{tpu_custom_call.1} parent=27 // pred_region
          %s485 = ssub.s32 32, 32
          %486 = vsyncadd %s472, %s485
          %s487 = sadd.s32 %s30, %s29
          %s488 = smul.addr %s487, 32
          %s489 = scalar_lea.hbm %s2, %s488
          %s491 = sshll.u32 %s475, 4
          %s492 = int_to_ptr.vmem [resolvable:$true] %s491
          %494 = dma.vmem_to_hbm [thread:$0]  %s492, 32, %s489, %s472
        $region40: #{tpu_custom_call.1} parent=27 // pred_fallthru
          _
        // Predicated region
        $region41: #{tpu_custom_call.1} parent=27 // pred_check
          %p495 = pneg %p134
        $region42: #{tpu_custom_call.1} parent=27 // pred_check_branch
          %497 = sbr.rel (%p495) target = $region44
        $region43: #{tpu_custom_call.1} parent=27 // pred_region
          %s499 = ssub.s32 32, 32
          %500 = vsyncadd %s477, %s499
          %s501 = sadd.s32 %s30, %s29
          %s502 = smul.addr %s501, 32
          %s503 = scalar_lea.hbm %s3, %s502
          %s505 = sshll.u32 %s480, 4
          %s506 = int_to_ptr.vmem [resolvable:$true] %s505
          %508 = dma.vmem_to_hbm [thread:$0]  %s506, 32, %s503, %s477
        $region44: #{tpu_custom_call.1} parent=27 // pred_fallthru
          _
      $region28: #{tpu_custom_call.1} parent=5 // pred_fallthru
        _
      %p509 = scmp.le.s32.totalorder 2, %s20
      // Predicated region
      $region45: #{tpu_custom_call.1} parent=5 // pred_check
        %p510 = pneg %p509
      $region46: #{tpu_custom_call.1} parent=5 // pred_check_branch
        %512 = sbr.rel (%p510) target = $region48
      $region47: #{tpu_custom_call.1} parent=5 // pred_region
        %s513 = ssub.s32 %s20, 2
        // Predicated region
        $region49: #{tpu_custom_call.1} parent=47 // pred_check
          %p514 = pneg %p112
        $region50: #{tpu_custom_call.1} parent=47 // pred_check_branch
          %516 = sbr.rel (%p514) target = $region52
        $region51: #{tpu_custom_call.1} parent=47 // pred_region
          %s517 = sand.u32 %s97, 1
          %s518 = scalar_lea.sflag [#allocation4], %s517
          %s519 = sand.u32 %s97, 1
          %s520 = smul.addr %s519, 2
          %s521 = scalar_lea.vmem [#allocation7], %s520
          %522 = dma.done %s518, 32
        $region52: #{tpu_custom_call.1} parent=47 // pred_fallthru
          _
        // Predicated region
        $region53: #{tpu_custom_call.1} parent=47 // pred_check
          %p523 = pneg %p140
        $region54: #{tpu_custom_call.1} parent=47 // pred_check_branch
          %525 = sbr.rel (%p523) target = $region56
        $region55: #{tpu_custom_call.1} parent=47 // pred_region
          %s526 = sand.u32 %s125, 1
          %s527 = scalar_lea.sflag [#allocation9], %s526
          %s528 = sand.u32 %s125, 1
          %s529 = smul.addr %s528, 2
          %s530 = scalar_lea.vmem [#allocation8], %s529
          %531 = dma.done %s527, 32
        $region56: #{tpu_custom_call.1} parent=47 // pred_fallthru
          _
      $region48: #{tpu_custom_call.1} parent=5 // pred_fallthru
        _
    $region6: #{tpu_custom_call.1} parent=1 // loop_footer
      %s24 = sadd.s32 1, %s20
    $region7: #{tpu_custom_call.1} parent=1 // loop_footer_branch
      %19 = sbr.rel target = $region3
    $region8: #{tpu_custom_call.1} parent=1 // loop_exit
      _
    %532 = vsyncpa [#allocation3], 1
    %s533 = scalar_lea.sflag [#allocation3], 1
    %534 = vsyncpa %s533, 1
    %535 = vsyncpa [#allocation6], 1
    %s536 = scalar_lea.sflag [#allocation6], 1
    %537 = vsyncpa %s536, 1
    %538 = vsyncpa [#allocation4], 1
    %s539 = scalar_lea.sflag [#allocation4], 1
    %540 = vsyncpa %s539, 1
    %541 = vsyncpa [#allocation9], 1
    %s542 = scalar_lea.sflag [#allocation9], 1
    %543 = vsyncpa %s542, 1

</llo_original>
